<compile_context>
chip_gen: v7x
topology: tpu7x:2x2x1
jax: 0.10.0
libtpu: 0.0.40
codegen_flags: <defaults>
</compile_context>

<pallas_src>
import functools
import math

import numpy as np
import jax
import jax.numpy as jnp
from jax.experimental import pallas as pl
from jax.experimental.pallas import tpu as pltpu

_TWO_PI = 2.0 * math.pi
_LN_EPS = 1e-6


def _gelu(x):
    # TODO(synk): nn.GELU() default is the exact erf form; tanh approximation is used
    # here (and in the reference check) because erf lowering in Mosaic is not guaranteed.
    return 0.5 * x * (1.0 + jnp.tanh(0.7978845608028654 * (x + 0.044715 * x * x * x)))


# ----------------------------------------------------------------------------
# Pallas kernels
# ----------------------------------------------------------------------------

def _sparse_prompt_kernel(pts_ref, lab_ref, g_ref, tab_ref, o_ref, *, inv_w, inv_h):
    """Point / box-corner embeddings: random-Fourier PE + label embedding adds."""
    pts = pts_ref[...]                              # (M, 2)  coords (already +0.5)
    lab = lab_ref[...]                              # (M, 1)  int32 labels
    g = g_ref[...]                                  # (2, C/2) gaussian matrix
    cx = 2.0 * (pts[:, 0:1] * inv_w) - 1.0          # (M, 1)
    cy = 2.0 * (pts[:, 1:2] * inv_h) - 1.0
    phase = _TWO_PI * (cx * g[0:1, :] + cy * g[1:2, :])                # (M, C/2)
    pe = jnp.concatenate([jnp.sin(phase), jnp.cos(phase)], axis=-1)    # (M, C)
    keep = (lab != -1).astype(jnp.float32)          # label -1: drop the PE
    emb = pe * keep
    tab = tab_ref[...]                              # (8, C): [not_a_point, pt0..pt3, 0...]
    for j in range(-1, 4):                          # static unroll, 5 tiny selects
        sel = (lab == j).astype(jnp.float32)        # (M, 1)
        emb = emb + sel * tab[j + 1:j + 2, :]
    o_ref[...] = emb


def _dense_pe_kernel(x_ref, y_ref, gx_ref, gy_ref, o_ref):
    """get_dense_pe(): channel-major (C, pixel-tile) output, phases built in-kernel."""
    c_half = gx_ref.shape[0]
    phase = _TWO_PI * (gx_ref[...] * x_ref[...] + gy_ref[...] * y_ref[...])  # (C/2, TP)
    o_ref[0:c_half, :] = jnp.sin(phase)
    o_ref[c_half:, :] = jnp.cos(phase)


def _mask_downscale_kernel(x_ref, a1_ref, b1_ref, avg_ref, g1_ref, t1_ref,
                           a2_ref, b2_ref, g2_ref, t2_ref, a3_ref, b3_ref, o_ref):
    """Fully fused mask_downscaling on a channels-first space-to-depth layout."""
    x = x_ref[0]                                                     # (16, TP)
    # conv1 (2x2 / stride 2) as a block-diagonal matmul
    h = jnp.dot(a1_ref[...], x, preferred_element_type=jnp.float32) + b1_ref[...]
    # LayerNorm2d over the C1 channels of each conv1-output pixel (group mean via matmul)
    mu = jnp.dot(avg_ref[...], h, preferred_element_type=jnp.float32)
    c = h - mu
    var = jnp.dot(avg_ref[...], c * c, preferred_element_type=jnp.float32)
    h = _gelu((c * jax.lax.rsqrt(var + _LN_EPS)) * g1_ref[...] + t1_ref[...])
    # conv2 (2x2 / stride 2): combines the 4 conv1 outputs of each patch -> plain matmul
    h = jnp.dot(a2_ref[...], h, preferred_element_type=jnp.float32) + b2_ref[...]
    # LayerNorm2d over all C2 channels (sublane reduce)
    mu = jnp.mean(h, axis=0, keepdims=True)
    c = h - mu
    var = jnp.mean(c * c, axis=0, keepdims=True)
    h = _gelu((c * jax.lax.rsqrt(var + _LN_EPS)) * g2_ref[...] + t2_ref[...])
    # conv3 (1x1) -> embed_dim
    o_ref[0] = jnp.dot(a3_ref[...], h, preferred_element_type=jnp.float32) + b3_ref[...]


# ----------------------------------------------------------------------------
# Wrappers
# ----------------------------------------------------------------------------

def _embed_sparse_prompts(params, cfg, points, boxes, bs):
    C = params["point_embeddings"].shape[1]
    c_half = params["gaussian"].shape[1]
    coord_parts, label_parts = [], []
    if points is not None:
        pts, labs = points
        pts = pts.astype(jnp.float32) + 0.5
        labs = labs.astype(jnp.int32)
        if boxes is None:                            # pad with a "not a point"
            pts = jnp.concatenate([pts, jnp.zeros((bs, 1, 2), jnp.float32)], axis=1)
            labs = jnp.concatenate([labs, -jnp.ones((bs, 1), jnp.int32)], axis=1)
        coord_parts.append(pts)
        label_parts.append(labs)
    if boxes is not None:                            # box corners == labels 2, 3
        corners = boxes.astype(jnp.float32).reshape(bs, 2, 2) + 0.5
        coord_parts.append(corners)
        label_parts.append(jnp.broadcast_to(jnp.array([2, 3], jnp.int32)[None, :], (bs, 2)))
    if not coord_parts:
        return jnp.zeros((bs, 0, C), jnp.float32)

    coords = jnp.concatenate(coord_parts, axis=1)    # (B, Nt, 2)
    labels = jnp.concatenate(label_parts, axis=1)    # (B, Nt)
    nt = coords.shape[1]
    m = bs * nt
    mp = ((m + 7) // 8) * 8                          # pad rows to a sublane multiple
    cflat = coords.reshape(m, 2)
    lflat = labels.reshape(m, 1)
    if mp != m:
        cflat = jnp.concatenate([cflat, jnp.zeros((mp - m, 2), jnp.float32)], axis=0)
        lflat = jnp.concatenate([lflat, jnp.full((mp - m, 1), 100, jnp.int32)], axis=0)

    table = jnp.zeros((8, C), jnp.float32)
    table = table.at[0].set(params["not_a_point"])
    table = table.at[1:5].set(params["point_embeddings"])

    inv_w = 1.0 / float(cfg["input_image_size"][1])
    inv_h = 1.0 / float(cfg["input_image_size"][0])
    kernel = functools.partial(_sparse_prompt_kernel, inv_w=inv_w, inv_h=inv_h)
    out = pl.pallas_call(
        kernel,
        out_shape=jax.ShapeDtypeStruct((mp, C), jnp.float32),
        grid=(1,),
        in_specs=[
            pl.BlockSpec((mp, 2), lambda i: (0, 0)),
            pl.BlockSpec((mp, 1), lambda i: (0, 0)),
            pl.BlockSpec((2, c_half), lambda i: (0, 0)),
            pl.BlockSpec((8, C), lambda i: (0, 0)),
        ],
        out_specs=pl.BlockSpec((mp, C), lambda i: (0, 0)),
        compiler_params=pltpu.CompilerParams(dimension_semantics=("arbitrary",)),
    )(cflat, lflat, params["gaussian"], table)
    return out[:m].reshape(bs, nt, C)


def get_dense_pe(params, cfg):
    """PositionEmbeddingRandom over the image-embedding grid -> (1, C, H, W)."""
    H, W = cfg["image_embedding_size"]
    g = params["gaussian"]
    c_half = g.shape[1]
    C = 2 * c_half
    hw = H * W
    ys = 2.0 * (jnp.arange(H, dtype=jnp.float32) + 0.5) / H - 1.0
    xs = 2.0 * (jnp.arange(W, dtype=jnp.float32) + 0.5) / W - 1.0
    x_row = jnp.tile(xs, H).reshape(1, hw)           # x-coord of flat pixel q = i*W + j
    y_row = jnp.repeat(ys, W).reshape(1, hw)
    gx = g[0].reshape(c_half, 1)
    gy = g[1].reshape(c_half, 1)
    tp = 512 if hw % 512 == 0 else (128 if hw % 128 == 0 else hw)
    pe = pl.pallas_call(
        _dense_pe_kernel,
        out_shape=jax.ShapeDtypeStruct((C, hw), jnp.float32),
        grid=(hw // tp,),
        in_specs=[
            pl.BlockSpec((1, tp), lambda t: (0, t)),
            pl.BlockSpec((1, tp), lambda t: (0, t)),
            pl.BlockSpec((c_half, 1), lambda t: (0, 0)),
            pl.BlockSpec((c_half, 1), lambda t: (0, 0)),
        ],
        out_specs=pl.BlockSpec((C, tp), lambda t: (0, t)),
        compiler_params=pltpu.CompilerParams(dimension_semantics=("parallel",)),
    )(x_row, y_row, gx, gy)
    return pe.reshape(1, C, H, W)                    # free reshape (channel-major layout)


def _prep_mask_matrices(mdp):
    """Rewrite the strided convs / LN affines as matrices for the fused kernel."""
    w1, b1 = mdp["w1"], mdp["b1"]                    # (C1, 1, 2, 2), (C1,)
    w2, b2 = mdp["w2"], mdp["b2"]                    # (C2, C1, 2, 2), (C2,)
    w3, b3 = mdp["w3"], mdp["b3"]                    # (C, C2, 1, 1), (C,)
    c1, c2, C = w1.shape[0], w2.shape[0], w3.shape[0]
    r1 = 4 * c1
    w1f = w1.reshape(c1, 4)                                          # [c1, u*2+v]
    a1 = jnp.kron(jnp.eye(4, dtype=jnp.float32), w1f)                # (4*C1, 16) block-diag
    avg = jnp.kron(jnp.eye(4, dtype=jnp.float32),
                   jnp.ones((c1, c1), jnp.float32) / c1)             # per-quadrant channel mean
    a2 = jnp.transpose(w2, (0, 2, 3, 1)).reshape(c2, r1)             # [c2, (a*2+b)*C1 + c1]
    a3 = w3.reshape(C, c2)
    return dict(
        a1=a1, b1=jnp.tile(b1, 4).reshape(r1, 1), avg=avg,
        g1=jnp.tile(mdp["ln1_w"], 4).reshape(r1, 1),
        t1=jnp.tile(mdp["ln1_b"], 4).reshape(r1, 1),
        a2=a2, b2=b2.reshape(c2, 1),
        g2=mdp["ln2_w"].reshape(c2, 1), t2=mdp["ln2_b"].reshape(c2, 1),
        a3=a3, b3=b3.reshape(C, 1),
    )


def _embed_masks(params, masks):
    mm = _prep_mask_matrices(params["mask_down"])
    B = masks.shape[0]
    h4, w4 = masks.shape[2], masks.shape[3]
    H, W = h4 // 4, w4 // 4
    hw = H * W
    # space-to-depth: per output pixel (i, j), its 4x4 input patch ordered
    # [conv1-quadrant (a, b) major, in-quadrant (u, v) minor] -> 16 rows, H*W columns.
    x16 = (masks.reshape(B, H, 2, 2, W, 2, 2)
                .transpose(0, 2, 5, 3, 6, 1, 4)
                .reshape(B, 16, hw))
    r1 = mm["a1"].shape[0]
    c2 = mm["a2"].shape[0]
    C = mm["a3"].shape[0]
    tp = 256 if hw % 256 == 0 else (128 if hw % 128 == 0 else hw)
    const = lambda b, t: (0, 0)
    out = pl.pallas_call(
        _mask_downscale_kernel,
        out_shape=jax.ShapeDtypeStruct((B, C, hw), jnp.float32),
        grid=(B, hw // tp),
        in_specs=[
            pl.BlockSpec((1, 16, tp), lambda b, t: (b, 0, t)),
            pl.BlockSpec((r1, 16), const),
            pl.BlockSpec((r1, 1), const),
            pl.BlockSpec((r1, r1), const),
            pl.BlockSpec((r1, 1), const),
            pl.BlockSpec((r1, 1), const),
            pl.BlockSpec((c2, r1), const),
            pl.BlockSpec((c2, 1), const),
            pl.BlockSpec((c2, 1), const),
            pl.BlockSpec((c2, 1), const),
            pl.BlockSpec((C, c2), const),
            pl.BlockSpec((C, 1), const),
        ],
        out_specs=pl.BlockSpec((1, C, tp), lambda b, t: (b, 0, t)),
        compiler_params=pltpu.CompilerParams(dimension_semantics=("parallel", "parallel")),
    )(x16, mm["a1"], mm["b1"], mm["avg"], mm["g1"], mm["t1"],
      mm["a2"], mm["b2"], mm["g2"], mm["t2"], mm["a3"], mm["b3"])
    return out.reshape(B, C, H, W)                   # free reshape (channel-major layout)


def prompt_encoder_forward(params, cfg, points=None, boxes=None, masks=None):
    """Mirrors PromptEncoder.forward: returns (sparse_embeddings, dense_embeddings)."""
    C = cfg["embed_dim"]
    H, W = cfg["image_embedding_size"]
    if points is not None:
        bs = points[0].shape[0]
    elif boxes is not None:
        bs = boxes.shape[0]
    elif masks is not None:
        bs = masks.shape[0]
    else:
        bs = 1
    sparse = _embed_sparse_prompts(params, cfg, points, boxes, bs)
    if masks is not None:
        dense = _embed_masks(params, masks)
    else:
        dense = jnp.broadcast_to(params["no_mask"].reshape(1, C, 1, 1), (bs, C, H, W))
    return sparse, dense


def init_params(key, embed_dim=256, mask_in_chans=16):
    C = embed_dim
    c_half = C // 2
    c1 = mask_in_chans // 4
    c2 = mask_in_chans
    ks = jax.random.split(key, 14)
    return {
        "gaussian": jax.random.normal(ks[0], (2, c_half), jnp.float32),
        "point_embeddings": 0.1 * jax.random.normal(ks[1], (4, C), jnp.float32),
        "not_a_point": 0.1 * jax.random.normal(ks[2], (C,), jnp.float32),
        "no_mask": 0.1 * jax.random.normal(ks[3], (C,), jnp.float32),
        "mask_down": {
            "w1": 0.5 * jax.random.normal(ks[4], (c1, 1, 2, 2), jnp.float32),
            "b1": 0.1 * jax.random.normal(ks[5], (c1,), jnp.float32),
            "ln1_w": 1.0 + 0.1 * jax.random.normal(ks[6], (c1,), jnp.float32),
            "ln1_b": 0.1 * jax.random.normal(ks[7], (c1,), jnp.float32),
            "w2": jax.random.normal(ks[8], (c2, c1, 2, 2), jnp.float32) / math.sqrt(4.0 * c1),
            "b2": 0.1 * jax.random.normal(ks[9], (c2,), jnp.float32),
            "ln2_w": 1.0 + 0.1 * jax.random.normal(ks[10], (c2,), jnp.float32),
            "ln2_b": 0.1 * jax.random.normal(ks[11], (c2,), jnp.float32),
            "w3": jax.random.normal(ks[12], (C, c2, 1, 1), jnp.float32) / math.sqrt(float(c2)),
            "b3": 0.1 * jax.random.normal(ks[13], (C,), jnp.float32),
        },
    }


# ----------------------------------------------------------------------------
# numpy reference (float64)
# ----------------------------------------------------------------------------

def _np_gelu(x):
    return 0.5 * x * (1.0 + np.tanh(0.7978845608028654 * (x + 0.044715 * x ** 3)))


def _np_pe_encoding(coords, gaussian):
    c = 2.0 * coords - 1.0
    proj = 2.0 * np.pi * (c @ gaussian)
    return np.concatenate([np.sin(proj), np.cos(proj)], axis=-1)


def _np_embed_points(pts, labels, pnp, cfg, pad):
    pts = pts + 0.5
    if pad:
        pts = np.concatenate([pts, np.zeros((pts.shape[0], 1, 2))], axis=1)
        labels = np.concatenate([labels, -np.ones((labels.shape[0], 1), labels.dtype)], axis=1)
    coords = pts.copy()
    coords[..., 0] /= cfg["input_image_size"][1]
    coords[..., 1] /= cfg["input_image_size"][0]
    emb = _np_pe_encoding(coords, pnp["gaussian"])
    emb = np.where((labels == -1)[..., None], 0.0, emb)
    emb = emb + (labels == -1)[..., None] * pnp["not_a_point"][None, None, :]
    for j in range(4):
        emb = emb + (labels == j)[..., None] * pnp["point_embeddings"][j][None, None, :]
    return emb


def _np_embed_boxes(boxes, pnp, cfg):
    boxes = boxes + 0.5
    coords = boxes.reshape(-1, 2, 2).copy()
    coords[..., 0] /= cfg["input_image_size"][1]
    coords[..., 1] /= cfg["input_image_size"][0]
    emb = _np_pe_encoding(coords, pnp["gaussian"])
    emb[:, 0, :] += pnp["point_embeddings"][2]
    emb[:, 1, :] += pnp["point_embeddings"][3]
    return emb


def _np_conv2x2s2(x, w, b):
    B, c, hh, ww = x.shape
    xr = x.reshape(B, c, hh // 2, 2, ww // 2, 2)
    return np.einsum("bciujv,ocuv->boij", xr, w) + b[None, :, None, None]


def _np_layernorm2d(x, w, b):
    u = x.mean(1, keepdims=True)
    s = ((x - u) ** 2).mean(1, keepdims=True)
    return w[None, :, None, None] * ((x - u) / np.sqrt(s + 1e-6)) + b[None, :, None, None]


def _np_embed_masks(masks, mdp):
    h = _np_conv2x2s2(masks, mdp["w1"], mdp["b1"])
    h = _np_gelu(_np_layernorm2d(h, mdp["ln1_w"], mdp["ln1_b"]))
    h = _np_conv2x2s2(h, mdp["w2"], mdp["b2"])
    h = _np_gelu(_np_layernorm2d(h, mdp["ln2_w"], mdp["ln2_b"]))
    C, c2 = mdp["w3"].shape[0], mdp["w3"].shape[1]
    return np.einsum("bchw,oc->bohw", h, mdp["w3"].reshape(C, c2)) + mdp["b3"][None, :, None, None]


def _np_dense_pe(pnp, cfg):
    H, W = cfg["image_embedding_size"]
    y = (np.arange(H) + 0.5) / H
    x = (np.arange(W) + 0.5) / W
    xe, ye = np.meshgrid(x, y)
    pe = _np_pe_encoding(np.stack([xe, ye], axis=-1), pnp["gaussian"])
    return pe.transpose(2, 0, 1)[None]


def _np_forward(pnp, cfg, points=None, boxes=None, masks=None):
    C = cfg["embed_dim"]
    H, W = cfg["image_embedding_size"]
    if points is not None:
        bs = points[0].shape[0]
    elif boxes is not None:
        bs = boxes.shape[0]
    elif masks is not None:
        bs = masks.shape[0]
    else:
        bs = 1
    parts = []
    if points is not None:
        parts.append(_np_embed_points(points[0], points[1], pnp, cfg, pad=boxes is None))
    if boxes is not None:
        parts.append(_np_embed_boxes(boxes, pnp, cfg))
    sparse = np.concatenate(parts, axis=1) if parts else np.zeros((bs, 0, C))
    if masks is not None:
        dense = _np_embed_masks(masks, pnp["mask_down"])
    else:
        dense = np.broadcast_to(pnp["no_mask"].reshape(1, C, 1, 1), (bs, C, H, W))
    return sparse, dense


# ----------------------------------------------------------------------------
# main
# ----------------------------------------------------------------------------

if __name__ == "__main__":
    cfg = dict(embed_dim=256, image_embedding_size=(16, 16),
               input_image_size=(64, 64), mask_in_chans=16)

    key = jax.random.PRNGKey(0)
    key, kp = jax.random.split(key)
    params = init_params(kp, cfg["embed_dim"], cfg["mask_in_chans"])

    B, N = 2, 5
    key, k1, k2, k3, k4 = jax.random.split(key, 5)
    points = jax.random.uniform(k1, (B, N, 2), jnp.float32, 0.0, float(cfg["input_image_size"][0]))
    labels = jax.random.randint(k2, (B, N), 0, 4)
    boxes = jax.random.uniform(k3, (B, 2, 2), jnp.float32, 0.0, float(cfg["input_image_size"][0]))
    masks = jax.random.normal(
        k4, (B, 1, 4 * cfg["image_embedding_size"][0], 4 * cfg["image_embedding_size"][1]),
        jnp.float32)

    # full forward: points + boxes + masks
    sparse, dense = prompt_encoder_forward(params, cfg, (points, labels), boxes, masks)
    # points only (exercises padding / label==-1 / no_mask branch)
    sparse2, dense2 = prompt_encoder_forward(params, cfg, (points, labels), None, None)
    dense_pe = get_dense_pe(params, cfg)
    jax.block_until_ready((sparse, dense, sparse2, dense2, dense_pe))

    assert sparse.shape == (B, N + 2, cfg["embed_dim"]), sparse.shape
    assert dense.shape == (B, cfg["embed_dim"], *cfg["image_embedding_size"]), dense.shape
    assert sparse2.shape == (B, N + 1, cfg["embed_dim"]), sparse2.shape
    assert dense2.shape == (B, cfg["embed_dim"], *cfg["image_embedding_size"]), dense2.shape
    assert dense_pe.shape == (1, cfg["embed_dim"], *cfg["image_embedding_size"]), dense_pe.shape

    pnp = jax.tree_util.tree_map(lambda a: np.asarray(a, np.float64), params)
    pts_np = np.asarray(points, np.float64)
    lab_np = np.asarray(labels)
    box_np = np.asarray(boxes, np.float64)
    msk_np = np.asarray(masks, np.float64)

    ref_sparse, ref_dense = _np_forward(pnp, cfg, (pts_np, lab_np), box_np, msk_np)
    ref_sparse2, ref_dense2 = _np_forward(pnp, cfg, (pts_np, lab_np), None, None)
    ref_pe = _np_dense_pe(pnp, cfg)

    tol = dict(rtol=1e-4, atol=1e-4)
    np.testing.assert_allclose(np.asarray(sparse), ref_sparse, **tol)
    np.testing.assert_allclose(np.asarray(dense), ref_dense, **tol)
    np.testing.assert_allclose(np.asarray(sparse2), ref_sparse2, **tol)
    np.testing.assert_allclose(np.asarray(dense2), ref_dense2, **tol)
    np.testing.assert_allclose(np.asarray(dense_pe), ref_pe, **tol)

    print("KERNEL_OK")
</pallas_src>

<mosaic_0001>
module attributes {stable_mosaic.version = 11 : i64} {
  func.func @_sparse_prompt_kernel(%arg0: i32, %arg1: memref<16x2xf32, #tpu.memory_space<vmem>>, %arg2: memref<16x1xi32, #tpu.memory_space<vmem>>, %arg3: memref<2x128xf32, #tpu.memory_space<vmem>>, %arg4: memref<8x256xf32, #tpu.memory_space<vmem>>, %arg5: memref<16x256xf32, #tpu.memory_space<vmem>>) attributes {dimension_semantics = [#tpu.dimension_semantics<arbitrary>], iteration_bounds = array<i64: 1>, scalar_prefetch = 0 : i64, scratch_operands = 0 : i64, tpu.core_type = #tpu.core_type<tc>, window_params = [{pipeline_mode = #tpu.pipeline_mode<synchronous>, transform_indices = @transform_0, window_bounds = array<i64: 16, 2>}, {pipeline_mode = #tpu.pipeline_mode<synchronous>, transform_indices = @transform_1, window_bounds = array<i64: 16, 1>}, {pipeline_mode = #tpu.pipeline_mode<synchronous>, transform_indices = @transform_2, window_bounds = array<i64: 2, 128>}, {pipeline_mode = #tpu.pipeline_mode<synchronous>, transform_indices = @transform_3, window_bounds = array<i64: 8, 256>}, {pipeline_mode = #tpu.pipeline_mode<synchronous>, transform_indices = @transform_4, window_bounds = array<i64: 16, 256>}]} {
    %c0 = arith.constant 0 : index
    %c0_0 = arith.constant 0 : index
    %0 = vector.load %arg1[%c0, %c0_0] : memref<16x2xf32, #tpu.memory_space<vmem>>, vector<16x2xf32>
    %c0_1 = arith.constant 0 : index
    %c0_2 = arith.constant 0 : index
    %1 = vector.load %arg2[%c0_1, %c0_2] : memref<16x1xi32, #tpu.memory_space<vmem>>, vector<16x1xi32>
    %c0_3 = arith.constant 0 : index
    %c0_4 = arith.constant 0 : index
    %2 = vector.load %arg3[%c0_3, %c0_4] : memref<2x128xf32, #tpu.memory_space<vmem>>, vector<2x128xf32>
    %3 = vector.extract_strided_slice %0 {offsets = [0, 0], sizes = [16, 1], strides = [1, 1]} : vector<16x2xf32> to vector<16x1xf32>
    %cst = arith.constant 1.562500e-02 : f32
    %4 = vector.broadcast %cst : f32 to vector<16x1xf32>
    %5 = arith.mulf %3, %4 : vector<16x1xf32>
    %cst_5 = arith.constant 2.000000e+00 : f32
    %6 = vector.broadcast %cst_5 : f32 to vector<16x1xf32>
    %7 = arith.mulf %6, %5 : vector<16x1xf32>
    %cst_6 = arith.constant 1.000000e+00 : f32
    %8 = vector.broadcast %cst_6 : f32 to vector<16x1xf32>
    %9 = arith.subf %7, %8 : vector<16x1xf32>
    %10 = vector.extract_strided_slice %0 {offsets = [0, 1], sizes = [16, 1], strides = [1, 1]} : vector<16x2xf32> to vector<16x1xf32>
    %cst_7 = arith.constant 1.562500e-02 : f32
    %11 = vector.broadcast %cst_7 : f32 to vector<16x1xf32>
    %12 = arith.mulf %10, %11 : vector<16x1xf32>
    %cst_8 = arith.constant 2.000000e+00 : f32
    %13 = vector.broadcast %cst_8 : f32 to vector<16x1xf32>
    %14 = arith.mulf %13, %12 : vector<16x1xf32>
    %cst_9 = arith.constant 1.000000e+00 : f32
    %15 = vector.broadcast %cst_9 : f32 to vector<16x1xf32>
    %16 = arith.subf %14, %15 : vector<16x1xf32>
    %17 = vector.extract_strided_slice %2 {offsets = [0, 0], sizes = [1, 128], strides = [1, 1]} : vector<2x128xf32> to vector<1x128xf32>
    %18 = vector.broadcast %9 : vector<16x1xf32> to vector<16x128xf32>
    %19 = vector.broadcast %17 : vector<1x128xf32> to vector<16x128xf32>
    %20 = arith.mulf %18, %19 : vector<16x128xf32>
    %21 = vector.extract_strided_slice %2 {offsets = [1, 0], sizes = [1, 128], strides = [1, 1]} : vector<2x128xf32> to vector<1x128xf32>
    %22 = vector.broadcast %16 : vector<16x1xf32> to vector<16x128xf32>
    %23 = vector.broadcast %21 : vector<1x128xf32> to vector<16x128xf32>
    %24 = arith.mulf %22, %23 : vector<16x128xf32>
    %25 = arith.addf %20, %24 : vector<16x128xf32>
    %cst_10 = arith.constant 6.28318548 : f32
    %26 = vector.broadcast %cst_10 : f32 to vector<16x128xf32>
    %27 = arith.mulf %26, %25 : vector<16x128xf32>
    %28 = math.sin %27 : vector<16x128xf32>
    %29 = math.cos %27 : vector<16x128xf32>
    %30 = tpu.concatenate %28, %29 in 1 : vector<16x128xf32>, vector<16x128xf32> -> vector<16x256xf32>
    %c-1_i32 = arith.constant -1 : i32
    %31 = vector.broadcast %c-1_i32 : i32 to vector<16x1xi32>
    %32 = arith.cmpi ne, %1, %31 : vector<16x1xi32>
    %33 = arith.extui %32 : vector<16x1xi1> to vector<16x1xi32>
    %34 = arith.sitofp %33 : vector<16x1xi32> to vector<16x1xf32>
    %35 = vector.broadcast %34 : vector<16x1xf32> to vector<16x256xf32>
    %36 = arith.mulf %30, %35 : vector<16x256xf32>
    %c0_11 = arith.constant 0 : index
    %c0_12 = arith.constant 0 : index
    %37 = vector.load %arg4[%c0_11, %c0_12] : memref<8x256xf32, #tpu.memory_space<vmem>>, vector<8x256xf32>
    %c-1_i32_13 = arith.constant -1 : i32
    %38 = vector.broadcast %c-1_i32_13 : i32 to vector<16x1xi32>
    %39 = arith.cmpi eq, %1, %38 : vector<16x1xi32>
    %40 = arith.extui %39 : vector<16x1xi1> to vector<16x1xi32>
    %41 = arith.sitofp %40 : vector<16x1xi32> to vector<16x1xf32>
    %42 = vector.extract_strided_slice %37 {offsets = [0, 0], sizes = [1, 256], strides = [1, 1]} : vector<8x256xf32> to vector<1x256xf32>
    %43 = vector.broadcast %41 : vector<16x1xf32> to vector<16x256xf32>
    %44 = vector.broadcast %42 : vector<1x256xf32> to vector<16x256xf32>
    %45 = arith.mulf %43, %44 : vector<16x256xf32>
    %46 = arith.addf %36, %45 : vector<16x256xf32>
    %c0_i32 = arith.constant 0 : i32
    %47 = vector.broadcast %c0_i32 : i32 to vector<16x1xi32>
    %48 = arith.cmpi eq, %1, %47 : vector<16x1xi32>
    %49 = arith.extui %48 : vector<16x1xi1> to vector<16x1xi32>
    %50 = arith.sitofp %49 : vector<16x1xi32> to vector<16x1xf32>
    %51 = vector.extract_strided_slice %37 {offsets = [1, 0], sizes = [1, 256], strides = [1, 1]} : vector<8x256xf32> to vector<1x256xf32>
    %52 = vector.broadcast %50 : vector<16x1xf32> to vector<16x256xf32>
    %53 = vector.broadcast %51 : vector<1x256xf32> to vector<16x256xf32>
    %54 = arith.mulf %52, %53 : vector<16x256xf32>
    %55 = arith.addf %46, %54 : vector<16x256xf32>
    %c1_i32 = arith.constant 1 : i32
    %56 = vector.broadcast %c1_i32 : i32 to vector<16x1xi32>
    %57 = arith.cmpi eq, %1, %56 : vector<16x1xi32>
    %58 = arith.extui %57 : vector<16x1xi1> to vector<16x1xi32>
    %59 = arith.sitofp %58 : vector<16x1xi32> to vector<16x1xf32>
    %60 = vector.extract_strided_slice %37 {offsets = [2, 0], sizes = [1, 256], strides = [1, 1]} : vector<8x256xf32> to vector<1x256xf32>
    %61 = vector.broadcast %59 : vector<16x1xf32> to vector<16x256xf32>
    %62 = vector.broadcast %60 : vector<1x256xf32> to vector<16x256xf32>
    %63 = arith.mulf %61, %62 : vector<16x256xf32>
    %64 = arith.addf %55, %63 : vector<16x256xf32>
    %c2_i32 = arith.constant 2 : i32
    %65 = vector.broadcast %c2_i32 : i32 to vector<16x1xi32>
    %66 = arith.cmpi eq, %1, %65 : vector<16x1xi32>
    %67 = arith.extui %66 : vector<16x1xi1> to vector<16x1xi32>
    %68 = arith.sitofp %67 : vector<16x1xi32> to vector<16x1xf32>
    %69 = vector.extract_strided_slice %37 {offsets = [3, 0], sizes = [1, 256], strides = [1, 1]} : vector<8x256xf32> to vector<1x256xf32>
    %70 = vector.broadcast %68 : vector<16x1xf32> to vector<16x256xf32>
    %71 = vector.broadcast %69 : vector<1x256xf32> to vector<16x256xf32>
    %72 = arith.mulf %70, %71 : vector<16x256xf32>
    %73 = arith.addf %64, %72 : vector<16x256xf32>
    %c3_i32 = arith.constant 3 : i32
    %74 = vector.broadcast %c3_i32 : i32 to vector<16x1xi32>
    %75 = arith.cmpi eq, %1, %74 : vector<16x1xi32>
    %76 = arith.extui %75 : vector<16x1xi1> to vector<16x1xi32>
    %77 = arith.sitofp %76 : vector<16x1xi32> to vector<16x1xf32>
    %78 = vector.extract_strided_slice %37 {offsets = [4, 0], sizes = [1, 256], strides = [1, 1]} : vector<8x256xf32> to vector<1x256xf32>
    %79 = vector.broadcast %77 : vector<16x1xf32> to vector<16x256xf32>
    %80 = vector.broadcast %78 : vector<1x256xf32> to vector<16x256xf32>
    %81 = arith.mulf %79, %80 : vector<16x256xf32>
    %82 = arith.addf %73, %81 : vector<16x256xf32>
    %c0_14 = arith.constant 0 : index
    %c0_15 = arith.constant 0 : index
    %83 = vector.load %arg5[%c0_14, %c0_15] : memref<16x256xf32, #tpu.memory_space<vmem>>, vector<16x256xf32>
    tpu.vector_store %arg5[%c0_14, %c0_15], %82 {strides = array<i32>} : memref<16x256xf32, #tpu.memory_space<vmem>>, vector<16x256xf32>,
    return
  }
  func.func @transform_0(%arg0: i32) -> (i32, i32) {
    %c0_i32 = arith.constant 0 : i32
    %c0_i32_0 = arith.constant 0 : i32
    %c0_i32_1 = arith.constant 0 : i32
    return %c0_i32, %c0_i32_0 : i32, i32
  }
  func.func @transform_1(%arg0: i32) -> (i32, i32) {
    %c0_i32 = arith.constant 0 : i32
    %c0_i32_0 = arith.constant 0 : i32
    %c0_i32_1 = arith.constant 0 : i32
    return %c0_i32, %c0_i32_0 : i32, i32
  }
  func.func @transform_2(%arg0: i32) -> (i32, i32) {
    %c0_i32 = arith.constant 0 : i32
    %c0_i32_0 = arith.constant 0 : i32
    %c0_i32_1 = arith.constant 0 : i32
    return %c0_i32, %c0_i32_0 : i32, i32
  }
  func.func @transform_3(%arg0: i32) -> (i32, i32) {
    %c0_i32 = arith.constant 0 : i32
    %c0_i32_0 = arith.constant 0 : i32
    %c0_i32_1 = arith.constant 0 : i32
    return %c0_i32, %c0_i32_0 : i32, i32
  }
  func.func @transform_4(%arg0: i32) -> (i32, i32) {
    %c0_i32 = arith.constant 0 : i32
    %c0_i32_0 = arith.constant 0 : i32
    %c0_i32_1 = arith.constant 0 : i32
    return %c0_i32, %c0_i32_0 : i32, i32
  }
}

</mosaic_0001>

<llo_original>
// kernel: tpu_custom_call.1
$region0: #{tpu_custom_call.1}
  #allocation0 [shape = 'u32[]', space=smem, size = 0x4, offset = 0x4, fixed_abs, tag = 'smem constant byte address 0x4 - core index']
  #allocation1 [shape = 'u32[144,128]{1,0:T(1,128)}', space=vmem, size = 0x12000, scoped, tag = 'internal scratch']
  %s0 = inlined_call_operand.vmem [shape: f32[16,2], index: 0, kind: input, shape index: {}]
  %s1 = inlined_call_operand.vmem [shape: s32[16,1], index: 1, kind: input, shape index: {}]
  %s2 = inlined_call_operand.vmem [shape: f32[2,128], index: 2, kind: input, shape index: {}]
  %s3 = inlined_call_operand.vmem [shape: f32[8,256], index: 3, kind: input, shape index: {}]
  %s4 = inlined_call_operand.hbm [shape: f32[16,256], index: 4, kind: output, shape index: {}]
  %s5 = sld [smem:[#allocation0]]
  $region26: #{tpu_custom_call.1} parent=0
    _
  %s7 = ssub.s32 1, %s5
  %s8 = scalar_select 0, %s7, %s5
  $region1: #{tpu_custom_call.1} parent=0
    #allocation2 [shape = 'u8[16384]{0}', space=vmem, size = 0x4000, scoped, tag = 'output window, operand 0, single buffered']
    #allocation3 [shape = 's32[1]{0}', space=sflag, size = 0x4, scoped, tag = 'scoped memory for tpu_custom_call.1']
    %9 = vsyncpa [#allocation3], 0
    // Predicated region
    $region2: #{tpu_custom_call.1} parent=1 // pred_check
      _
    $region3: #{tpu_custom_call.1} parent=1 // pred_check_branch
      %11 = sbr.rel (0) target = $region5
    $region4: #{tpu_custom_call.1} parent=1 // pred_region
      _
    $region5: #{tpu_custom_call.1} parent=1 // pred_fallthru
      _
    // Predicated region
    $region6: #{tpu_custom_call.1} parent=1 // pred_check
      _
    $region7: #{tpu_custom_call.1} parent=1 // pred_check_branch
      %13 = sbr.rel (0) target = $region9
    $region8: #{tpu_custom_call.1} parent=1 // pred_region
      _
    $region9: #{tpu_custom_call.1} parent=1 // pred_fallthru
      _
    // Predicated region
    $region10: #{tpu_custom_call.1} parent=1 // pred_check
      _
    $region11: #{tpu_custom_call.1} parent=1 // pred_check_branch
      %15 = sbr.rel (0) target = $region13
    $region12: #{tpu_custom_call.1} parent=1 // pred_region
      _
    $region13: #{tpu_custom_call.1} parent=1 // pred_fallthru
      _
    // Predicated region
    $region14: #{tpu_custom_call.1} parent=1 // pred_check
      _
    $region15: #{tpu_custom_call.1} parent=1 // pred_check_branch
      %17 = sbr.rel (0) target = $region17
    $region16: #{tpu_custom_call.1} parent=1 // pred_region
      _
    $region17: #{tpu_custom_call.1} parent=1 // pred_fallthru
      _
    %v18 = vld [vmem:[%s0] sm:$0xff]
    %v19 = vld [vmem:[%s0 + $0x8] sm:$0xff]
    %v20 = vld [vmem:[%s1] sm:$0xff]
    %v21 = vld [vmem:[%s1 + $0x8] sm:$0xff]
    %v22 = vld [vmem:[%s2] sm:$0x3]
    %v23 = vmul.f32 %v18, 0.015625
    %v24 = vmul.f32 %v19, 0.015625
    %v25 = vmul.f32 %v23, 2.0
    %v26 = vmul.f32 %v24, 2.0
    %v27 = vsub.f32 %v25, 1.0
    %v28 = vsub.f32 %v26, 1.0
    %30 = vset.pattern.permute.xlu0 0
    %31 = vperm.xlu0 %30, %v27
    %v32 = vpop.permute.xlu0 %31
    %35 = vset.pattern.permute.xlu0 0
    %36 = vperm.xlu0 %35, %v28
    %v37 = vpop.permute.xlu0 %36
    %v39 = vlaneseq
    %v40 = vshrl.u32 %v39, 7
    %v41 = vsub.s32 0, %v40
    %v42 = vrot.slane %v22, %v41
    %v43 = vmul.f32 %v32, %v42
    %v44 = vmul.f32 %v37, %v42
    %45 = vset.pattern.permute.xlu0 1
    %46 = vperm.xlu0 %45, %v27
    %v47 = vpop.permute.xlu0 %46
    %49 = vset.pattern.permute.xlu0 1
    %50 = vperm.xlu0 %49, %v28
    %v51 = vpop.permute.xlu0 %50
    %v53 = vlaneseq
    %v54 = vshrl.u32 %v53, 7
    %v55 = vsub.s32 1, %v54
    %v56 = vrot.slane %v22, %v55
    %v57 = vmul.f32 %v47, %v56
    %v58 = vmul.f32 %v51, %v56
    %v59 = vadd.f32 %v43, %v57
    %v60 = vadd.f32 %v44, %v58
    %v61 = vmul.f32 %v59, 6.2831855
    %v62 = vmul.f32 %v60, 6.2831855
    %v63 = vand.u32 2147483647, %v61
    %vm64 = vcmp.le.f32.partialorder %v63, 0.7853982
    %vm65 = vcmp.lt.s32.totalorder %v61, 0
    %v66 = vand.u32 %v61, 2139095040
    %v67 = vshrl.u32 %v66, 23
    %v68 = vsub.s32 %v67, 127
    %v69 = vand.u32 2147483647, %v61
    %v70 = vand.u32 %v69, 8388607
    %v71 = vor.u32 %v70, 8388608
    %v72 = vsub.s32 0, %v71
    %v73 = vadd.s32 %v68, 1
    %vm74 = vcmp.gt.s32.totalorder %v73, 0
    %v75 = vsel %vm74, %v73, 0
    %v76 = vshrl.u32 %v75, 5
    %v77 = vand.u32 %v75, 31
    %v78 = vsub.s32 32, %v77
    %v79 = vshrl.u32 683565275, %v78
    %v80 = vshll.u32 683565275, %v77
    %v81 = vshrl.u32 2475754826, %v78
    %v82 = vor.u32 %v80, %v81
    %v83 = vshll.u32 2475754826, %v77
    %v84 = vshrl.u32 2131351028, %v78
    %v85 = vor.u32 %v83, %v84
    %v86 = vshll.u32 2131351028, %v77
    %v87 = vshrl.u32 2102212464, %v78
    %v88 = vor.u32 %v86, %v87
    %v89 = vshll.u32 2102212464, %v77
    %v90 = vshrl.u32 920167782, %v78
    %v91 = vor.u32 %v89, %v90
    %v92 = vshll.u32 920167782, %v77
    %v93 = vshrl.u32 1326507024, %v78
    %v94 = vor.u32 %v92, %v93
    %vm95 = vcmp.lt.s32.totalorder %v76, 1
    %vm96 = vcmp.lt.s32.totalorder %v76, 2
    %vm97 = vcmp.lt.s32.totalorder %v76, 3
    %vm98 = vcmp.lt.s32.totalorder %v76, 4
    %v99 = vsel %vm95, %v79, %v82
    %v100 = vsel %vm98, %v88, 2102212464
    %v101 = vsel %vm97, %v85, %v100
    %v102 = vsel %vm96, %v99, %v101
    %v103 = vsel %vm95, %v82, %v85
    %v104 = vsel %vm98, %v91, 920167782
    %v105 = vsel %vm97, %v88, %v104
    %v106 = vsel %vm96, %v103, %v105
    %v107 = vsel %vm95, %v85, %v88
    %v108 = vsel %vm98, %v94, 1326507024
    %v109 = vsel %vm97, %v91, %v108
    %v110 = vsel %vm96, %v107, %v109
    %v111 = vshll.u32 %v71, 8
    %v112 = vmul.u32.u64.compose %v111, %v110
    %v113 = vextract.low.u32 %v112
    %v114 = vextract.high.u32 %v112
    %v115 = vmul.u32.u64.compose %v111, %v106
    %v116 = vextract.low.u32 %v115
    %v117 = vextract.high.u32 %v115
    %v118 = vmul.u32 %v111, %v102
    %v119 = vadd.s32 %v114, %v116
    %vm120 = vc.u32 %v114, %v116
    %v121 = vadd.s32 %v117, 1
    %v122 = vsel %vm120, %v121, %v117
    %v123 = vadd.s32 %v118, %v122
    %v124 = vadd.s32 %v123, 536870912
    %v125 = vshrl.u32 %v124, 30
    %v126 = vshll.u32 %v125, 30
    %v127 = vsub.s32 %v123, %v126
    %vm128 = vcmp.lt.s32.totalorder %v127, 0
    %v129 = vsub.s32 0, %v127
    %v130 = vsel %vm128, %v129, %v127
    %v131 = vclz %v130
    %v132 = vsub.s32 %v131, 2
    %vm133 = vcmp.gt.s32.totalorder 0, %v132
    %v134 = vsel %vm133, 0, %v132
    %v135 = vsub.s32 32, %v134
    %v136 = vshll.u32 %v127, %v134
    %v137 = vshrl.u32 %v119, %v135
    %v138 = vor.u32 %v136, %v137
    %v139 = vsub.s32 4294967266, %v134
    %v140 = vadd.s32 %v139, 127
    %v141 = vshll.u32 %v140, 23
    %v142 = vor.u32 4788187, %v141
    %v143 = vand.u32 2147483647, %v142
    %v145 = vcvt.s32.f32 %v138
    %v146 = vmul.f32 %v145, %v143
    %v147 = vxor.u32 %v146, 2147483648
    %v148 = vsel %vm65, %v147, %v146
    %v149 = vsub.s32 4, %v125
    %v150 = vsel %vm65, %v149, %v125
    %v151 = vsel %vm64, %v61, %v148
    %v152 = vsel %vm64, 0, %v150
    %v153 = vcosq.f32.pop %v151
    %v154 = vsinq.f32.pop %v151
    %vm155 = vweird.f32 %v61
    %v156 = vadd.s32 %v152, 3
    %v157 = vand.u32 %v156, 3
    %vm158 = vcmp.lt.s32.totalorder %v157, 2
    %vm159 = vcmp.eq.s32.totalorder %v157, 0
    %v160 = vxor.u32 %v154, 2147483648
    %v161 = vsel %vm159, %v153, %v160
    %vm162 = vcmp.eq.s32.totalorder %v157, 2
    %v163 = vxor.u32 %v153, 2147483648
    %v164 = vsel %vm162, %v163, %v154
    %v165 = vsel %vm158, %v161, %v164
    %v166 = vsel %vm155, nan, %v165
    %v167 = vand.u32 2147483647, %v62
    %vm168 = vcmp.le.f32.partialorder %v167, 0.7853982
    %vm169 = vcmp.lt.s32.totalorder %v62, 0
    %v170 = vand.u32 %v62, 2139095040
    %v171 = vshrl.u32 %v170, 23
    %v172 = vsub.s32 %v171, 127
    %v173 = vand.u32 2147483647, %v62
    %v174 = vand.u32 %v173, 8388607
    %v175 = vor.u32 %v174, 8388608
    %v176 = vsub.s32 0, %v175
    %v177 = vadd.s32 %v172, 1
    %vm178 = vcmp.gt.s32.totalorder %v177, 0
    %v179 = vsel %vm178, %v177, 0
    %v180 = vshrl.u32 %v179, 5
    %v181 = vand.u32 %v179, 31
    %v182 = vsub.s32 32, %v181
    %v183 = vshrl.u32 683565275, %v182
    %v184 = vshll.u32 683565275, %v181
    %v185 = vshrl.u32 2475754826, %v182
    %v186 = vor.u32 %v184, %v185
    %v187 = vshll.u32 2475754826, %v181
    %v188 = vshrl.u32 2131351028, %v182
    %v189 = vor.u32 %v187, %v188
    %v190 = vshll.u32 2131351028, %v181
    %v191 = vshrl.u32 2102212464, %v182
    %v192 = vor.u32 %v190, %v191
    %v193 = vshll.u32 2102212464, %v181
    %v194 = vshrl.u32 920167782, %v182
    %v195 = vor.u32 %v193, %v194
    %v196 = vshll.u32 920167782, %v181
    %v197 = vshrl.u32 1326507024, %v182
    %v198 = vor.u32 %v196, %v197
    %vm199 = vcmp.lt.s32.totalorder %v180, 1
    %vm200 = vcmp.lt.s32.totalorder %v180, 2
    %vm201 = vcmp.lt.s32.totalorder %v180, 3
    %vm202 = vcmp.lt.s32.totalorder %v180, 4
    %v203 = vsel %vm199, %v183, %v186
    %v204 = vsel %vm202, %v192, 2102212464
    %v205 = vsel %vm201, %v189, %v204
    %v206 = vsel %vm200, %v203, %v205
    %v207 = vsel %vm199, %v186, %v189
    %v208 = vsel %vm202, %v195, 920167782
    %v209 = vsel %vm201, %v192, %v208
    %v210 = vsel %vm200, %v207, %v209
    %v211 = vsel %vm199, %v189, %v192
    %v212 = vsel %vm202, %v198, 1326507024
    %v213 = vsel %vm201, %v195, %v212
    %v214 = vsel %vm200, %v211, %v213
    %v215 = vshll.u32 %v175, 8
    %v216 = vmul.u32.u64.compose %v215, %v214
    %v217 = vextract.low.u32 %v216
    %v218 = vextract.high.u32 %v216
    %v219 = vmul.u32.u64.compose %v215, %v210
    %v220 = vextract.low.u32 %v219
    %v221 = vextract.high.u32 %v219
    %v222 = vmul.u32 %v215, %v206
    %v223 = vadd.s32 %v218, %v220
    %vm224 = vc.u32 %v218, %v220
    %v225 = vadd.s32 %v221, 1
    %v226 = vsel %vm224, %v225, %v221
    %v227 = vadd.s32 %v222, %v226
    %v228 = vadd.s32 %v227, 536870912
    %v229 = vshrl.u32 %v228, 30
    %v230 = vshll.u32 %v229, 30
    %v231 = vsub.s32 %v227, %v230
    %vm232 = vcmp.lt.s32.totalorder %v231, 0
    %v233 = vsub.s32 0, %v231
    %v234 = vsel %vm232, %v233, %v231
    %v235 = vclz %v234
    %v236 = vsub.s32 %v235, 2
    %vm237 = vcmp.gt.s32.totalorder 0, %v236
    %v238 = vsel %vm237, 0, %v236
    %v239 = vsub.s32 32, %v238
    %v240 = vshll.u32 %v231, %v238
    %v241 = vshrl.u32 %v223, %v239
    %v242 = vor.u32 %v240, %v241
    %v243 = vsub.s32 4294967266, %v238
    %v244 = vadd.s32 %v243, 127
    %v245 = vshll.u32 %v244, 23
    %v246 = vor.u32 4788187, %v245
    %v247 = vand.u32 2147483647, %v246
    %v249 = vcvt.s32.f32 %v242
    %v250 = vmul.f32 %v249, %v247
    %v251 = vxor.u32 %v250, 2147483648
    %v252 = vsel %vm169, %v251, %v250
    %v253 = vsub.s32 4, %v229
    %v254 = vsel %vm169, %v253, %v229
    %v255 = vsel %vm168, %v62, %v252
    %v256 = vsel %vm168, 0, %v254
    %v257 = vcosq.f32.pop %v255
    %v258 = vsinq.f32.pop %v255
    %vm259 = vweird.f32 %v62
    %v260 = vadd.s32 %v256, 3
    %v261 = vand.u32 %v260, 3
    %vm262 = vcmp.lt.s32.totalorder %v261, 2
    %vm263 = vcmp.eq.s32.totalorder %v261, 0
    %v264 = vxor.u32 %v258, 2147483648
    %v265 = vsel %vm263, %v257, %v264
    %vm266 = vcmp.eq.s32.totalorder %v261, 2
    %v267 = vxor.u32 %v257, 2147483648
    %v268 = vsel %vm266, %v267, %v258
    %v269 = vsel %vm262, %v265, %v268
    %v270 = vsel %vm259, nan, %v269
    %v271 = vand.u32 2147483647, %v61
    %vm272 = vcmp.le.f32.partialorder %v271, 0.7853982
    %vm273 = vcmp.lt.s32.totalorder %v61, 0
    %v274 = vand.u32 %v61, 2139095040
    %v275 = vshrl.u32 %v274, 23
    %v276 = vsub.s32 %v275, 127
    %v277 = vand.u32 2147483647, %v61
    %v278 = vand.u32 %v277, 8388607
    %v279 = vor.u32 %v278, 8388608
    %v280 = vsub.s32 0, %v279
    %v281 = vadd.s32 %v276, 1
    %vm282 = vcmp.gt.s32.totalorder %v281, 0
    %v283 = vsel %vm282, %v281, 0
    %v284 = vshrl.u32 %v283, 5
    %v285 = vand.u32 %v283, 31
    %v286 = vsub.s32 32, %v285
    %v287 = vshrl.u32 683565275, %v286
    %v288 = vshll.u32 683565275, %v285
    %v289 = vshrl.u32 2475754826, %v286
    %v290 = vor.u32 %v288, %v289
    %v291 = vshll.u32 2475754826, %v285
    %v292 = vshrl.u32 2131351028, %v286
    %v293 = vor.u32 %v291, %v292
    %v294 = vshll.u32 2131351028, %v285
    %v295 = vshrl.u32 2102212464, %v286
    %v296 = vor.u32 %v294, %v295
    %v297 = vshll.u32 2102212464, %v285
    %v298 = vshrl.u32 920167782, %v286
    %v299 = vor.u32 %v297, %v298
    %v300 = vshll.u32 920167782, %v285
    %v301 = vshrl.u32 1326507024, %v286
    %v302 = vor.u32 %v300, %v301
    %vm303 = vcmp.lt.s32.totalorder %v284, 1
    %vm304 = vcmp.lt.s32.totalorder %v284, 2
    %vm305 = vcmp.lt.s32.totalorder %v284, 3
    %vm306 = vcmp.lt.s32.totalorder %v284, 4
    %v307 = vsel %vm303, %v287, %v290
    %v308 = vsel %vm306, %v296, 2102212464
    %v309 = vsel %vm305, %v293, %v308
    %v310 = vsel %vm304, %v307, %v309
    %v311 = vsel %vm303, %v290, %v293
    %v312 = vsel %vm306, %v299, 920167782
    %v313 = vsel %vm305, %v296, %v312
    %v314 = vsel %vm304, %v311, %v313
    %v315 = vsel %vm303, %v293, %v296
    %v316 = vsel %vm306, %v302, 1326507024
    %v317 = vsel %vm305, %v299, %v316
    %v318 = vsel %vm304, %v315, %v317
    %v319 = vshll.u32 %v279, 8
    %v320 = vmul.u32.u64.compose %v319, %v318
    %v321 = vextract.low.u32 %v320
    %v322 = vextract.high.u32 %v320
    %v323 = vmul.u32.u64.compose %v319, %v314
    %v324 = vextract.low.u32 %v323
    %v325 = vextract.high.u32 %v323
    %v326 = vmul.u32 %v319, %v310
    %v327 = vadd.s32 %v322, %v324
    %vm328 = vc.u32 %v322, %v324
    %v329 = vadd.s32 %v325, 1
    %v330 = vsel %vm328, %v329, %v325
    %v331 = vadd.s32 %v326, %v330
    %v332 = vadd.s32 %v331, 536870912
    %v333 = vshrl.u32 %v332, 30
    %v334 = vshll.u32 %v333, 30
    %v335 = vsub.s32 %v331, %v334
    %vm336 = vcmp.lt.s32.totalorder %v335, 0
    %v337 = vsub.s32 0, %v335
    %v338 = vsel %vm336, %v337, %v335
    %v339 = vclz %v338
    %v340 = vsub.s32 %v339, 2
    %vm341 = vcmp.gt.s32.totalorder 0, %v340
    %v342 = vsel %vm341, 0, %v340
    %v343 = vsub.s32 32, %v342
    %v344 = vshll.u32 %v335, %v342
    %v345 = vshrl.u32 %v327, %v343
    %v346 = vor.u32 %v344, %v345
    %v347 = vsub.s32 4294967266, %v342
    %v348 = vadd.s32 %v347, 127
    %v349 = vshll.u32 %v348, 23
    %v350 = vor.u32 4788187, %v349
    %v351 = vand.u32 2147483647, %v350
    %v353 = vcvt.s32.f32 %v346
    %v354 = vmul.f32 %v353, %v351
    %v355 = vxor.u32 %v354, 2147483648
    %v356 = vsel %vm273, %v355, %v354
    %v357 = vsub.s32 4, %v333
    %v358 = vsel %vm273, %v357, %v333
    %v359 = vsel %vm272, %v61, %v356
    %v360 = vsel %vm272, 0, %v358
    %v361 = vcosq.f32.pop %v359
    %v362 = vsinq.f32.pop %v359
    %vm363 = vweird.f32 %v61
    %v364 = vand.u32 %v360, 3
    %vm365 = vcmp.lt.s32.totalorder %v364, 2
    %vm366 = vcmp.eq.s32.totalorder %v364, 0
    %v367 = vxor.u32 %v362, 2147483648
    %v368 = vsel %vm366, %v361, %v367
    %vm369 = vcmp.eq.s32.totalorder %v364, 2
    %v370 = vxor.u32 %v361, 2147483648
    %v371 = vsel %vm369, %v370, %v362
    %v372 = vsel %vm365, %v368, %v371
    %v373 = vsel %vm363, nan, %v372
    %v374 = vand.u32 2147483647, %v62
    %vm375 = vcmp.le.f32.partialorder %v374, 0.7853982
    %vm376 = vcmp.lt.s32.totalorder %v62, 0
    %v377 = vand.u32 %v62, 2139095040
    %v378 = vshrl.u32 %v377, 23
    %v379 = vsub.s32 %v378, 127
    %v380 = vand.u32 2147483647, %v62
    %v381 = vand.u32 %v380, 8388607
    %v382 = vor.u32 %v381, 8388608
    %v383 = vsub.s32 0, %v382
    %v384 = vadd.s32 %v379, 1
    %vm385 = vcmp.gt.s32.totalorder %v384, 0
    %v386 = vsel %vm385, %v384, 0
    %v387 = vshrl.u32 %v386, 5
    %v388 = vand.u32 %v386, 31
    %v389 = vsub.s32 32, %v388
    %v390 = vshrl.u32 683565275, %v389
    %v391 = vshll.u32 683565275, %v388
    %v392 = vshrl.u32 2475754826, %v389
    %v393 = vor.u32 %v391, %v392
    %v394 = vshll.u32 2475754826, %v388
    %v395 = vshrl.u32 2131351028, %v389
    %v396 = vor.u32 %v394, %v395
    %v397 = vshll.u32 2131351028, %v388
    %v398 = vshrl.u32 2102212464, %v389
    %v399 = vor.u32 %v397, %v398
    %v400 = vshll.u32 2102212464, %v388
    %v401 = vshrl.u32 920167782, %v389
    %v402 = vor.u32 %v400, %v401
    %v403 = vshll.u32 920167782, %v388
    %v404 = vshrl.u32 1326507024, %v389
    %v405 = vor.u32 %v403, %v404
    %vm406 = vcmp.lt.s32.totalorder %v387, 1
    %vm407 = vcmp.lt.s32.totalorder %v387, 2
    %vm408 = vcmp.lt.s32.totalorder %v387, 3
    %vm409 = vcmp.lt.s32.totalorder %v387, 4
    %v410 = vsel %vm406, %v390, %v393
    %v411 = vsel %vm409, %v399, 2102212464
    %v412 = vsel %vm408, %v396, %v411
    %v413 = vsel %vm407, %v410, %v412
    %v414 = vsel %vm406, %v393, %v396
    %v415 = vsel %vm409, %v402, 920167782
    %v416 = vsel %vm408, %v399, %v415
    %v417 = vsel %vm407, %v414, %v416
    %v418 = vsel %vm406, %v396, %v399
    %v419 = vsel %vm409, %v405, 1326507024
    %v420 = vsel %vm408, %v402, %v419
    %v421 = vsel %vm407, %v418, %v420
    %v422 = vshll.u32 %v382, 8
    %v423 = vmul.u32.u64.compose %v422, %v421
    %v424 = vextract.low.u32 %v423
    %v425 = vextract.high.u32 %v423
    %v426 = vmul.u32.u64.compose %v422, %v417
    %v427 = vextract.low.u32 %v426
    %v428 = vextract.high.u32 %v426
    %v429 = vmul.u32 %v422, %v413
    %v430 = vadd.s32 %v425, %v427
    %vm431 = vc.u32 %v425, %v427
    %v432 = vadd.s32 %v428, 1
    %v433 = vsel %vm431, %v432, %v428
    %v434 = vadd.s32 %v429, %v433
    %v435 = vadd.s32 %v434, 536870912
    %v436 = vshrl.u32 %v435, 30
    %v437 = vshll.u32 %v436, 30
    %v438 = vsub.s32 %v434, %v437
    %vm439 = vcmp.lt.s32.totalorder %v438, 0
    %v440 = vsub.s32 0, %v438
    %v441 = vsel %vm439, %v440, %v438
    %v442 = vclz %v441
    %v443 = vsub.s32 %v442, 2
    %vm444 = vcmp.gt.s32.totalorder 0, %v443
    %v445 = vsel %vm444, 0, %v443
    %v446 = vsub.s32 32, %v445
    %v447 = vshll.u32 %v438, %v445
    %v448 = vshrl.u32 %v430, %v446
    %v449 = vor.u32 %v447, %v448
    %v450 = vsub.s32 4294967266, %v445
    %v451 = vadd.s32 %v450, 127
    %v452 = vshll.u32 %v451, 23
    %v453 = vor.u32 4788187, %v452
    %v454 = vand.u32 2147483647, %v453
    %v456 = vcvt.s32.f32 %v449
    %v457 = vmul.f32 %v456, %v454
    %v458 = vxor.u32 %v457, 2147483648
    %v459 = vsel %vm376, %v458, %v457
    %v460 = vsub.s32 4, %v436
    %v461 = vsel %vm376, %v460, %v436
    %v462 = vsel %vm375, %v62, %v459
    %v463 = vsel %vm375, 0, %v461
    %v464 = vcosq.f32.pop %v462
    %v465 = vsinq.f32.pop %v462
    %vm466 = vweird.f32 %v62
    %v467 = vand.u32 %v463, 3
    %vm468 = vcmp.lt.s32.totalorder %v467, 2
    %vm469 = vcmp.eq.s32.totalorder %v467, 0
    %v470 = vxor.u32 %v465, 2147483648
    %v471 = vsel %vm469, %v464, %v470
    %vm472 = vcmp.eq.s32.totalorder %v467, 2
    %v473 = vxor.u32 %v464, 2147483648
    %v474 = vsel %vm472, %v473, %v465
    %v475 = vsel %vm468, %v471, %v474
    %v476 = vsel %vm466, nan, %v475
    %vm477 = vcmp.ne.s32.totalorder %v20, 4294967295
    %vm478 = vcmp.ne.s32.totalorder %v21, 4294967295
    %v479 = vsel %vm477, 1, 0
    %v480 = vsel %vm478, 1, 0
    %v481 = vcvt.s32.f32 %v479
    %v482 = vcvt.s32.f32 %v480
    %484 = vset.pattern.permute.xlu0 0
    %485 = vperm.xlu0 %484, %v481
    %v486 = vpop.permute.xlu0 %485
    %489 = vset.pattern.permute.xlu0 0
    %490 = vperm.xlu0 %489, %v482
    %v491 = vpop.permute.xlu0 %490
    %v493 = vmul.f32 %v166, %v486
    %v494 = vmul.f32 %v373, %v486
    %v495 = vmul.f32 %v270, %v491
    %v496 = vmul.f32 %v476, %v491
    %v497 = vld [vmem:[%s3] sm:$0xff]
    %v498 = vld [vmem:[%s3 + $0x8] sm:$0xff]
    %vm499 = vcmp.eq.s32.totalorder %v20, 4294967295
    %vm500 = vcmp.eq.s32.totalorder %v21, 4294967295
    %v501 = vsel %vm499, 1, 0
    %v502 = vsel %vm500, 1, 0
    %v503 = vcvt.s32.f32 %v501
    %v504 = vcvt.s32.f32 %v502
    %506 = vset.pattern.permute.xlu0 0
    %507 = vperm.xlu0 %506, %v503
    %v508 = vpop.permute.xlu0 %507
    %511 = vset.pattern.permute.xlu0 0
    %512 = vperm.xlu0 %511, %v504
    %v513 = vpop.permute.xlu0 %512
    %v515 = vlaneseq
    %v516 = vshrl.u32 %v515, 7
    %v517 = vsub.s32 0, %v516
    %v518 = vrot.slane %v497, %v517
    %v519 = vlaneseq
    %v520 = vshrl.u32 %v519, 7
    %v521 = vsub.s32 0, %v520
    %v522 = vrot.slane %v498, %v521
    %v523 = vmul.f32 %v508, %v518
    %v524 = vmul.f32 %v508, %v522
    %v525 = vmul.f32 %v513, %v518
    %v526 = vmul.f32 %v513, %v522
    %v527 = vadd.f32 %v493, %v523
    %v528 = vadd.f32 %v494, %v524
    %v529 = vadd.f32 %v495, %v525
    %v530 = vadd.f32 %v496, %v526
    %vm531 = vcmp.eq.s32.totalorder %v20, 0
    %vm532 = vcmp.eq.s32.totalorder %v21, 0
    %v533 = vsel %vm531, 1, 0
    %v534 = vsel %vm532, 1, 0
    %v535 = vcvt.s32.f32 %v533
    %v536 = vcvt.s32.f32 %v534
    %538 = vset.pattern.permute.xlu0 0
    %539 = vperm.xlu0 %538, %v535
    %v540 = vpop.permute.xlu0 %539
    %543 = vset.pattern.permute.xlu0 0
    %544 = vperm.xlu0 %543, %v536
    %v545 = vpop.permute.xlu0 %544
    %v547 = vlaneseq
    %v548 = vshrl.u32 %v547, 7
    %v549 = vsub.s32 1, %v548
    %v550 = vrot.slane %v497, %v549
    %v551 = vlaneseq
    %v552 = vshrl.u32 %v551, 7
    %v553 = vsub.s32 1, %v552
    %v554 = vrot.slane %v498, %v553
    %v555 = vmul.f32 %v540, %v550
    %v556 = vmul.f32 %v540, %v554
    %v557 = vmul.f32 %v545, %v550
    %v558 = vmul.f32 %v545, %v554
    %v559 = vadd.f32 %v527, %v555
    %v560 = vadd.f32 %v528, %v556
    %v561 = vadd.f32 %v529, %v557
    %v562 = vadd.f32 %v530, %v558
    %vm563 = vcmp.eq.s32.totalorder %v20, 1
    %vm564 = vcmp.eq.s32.totalorder %v21, 1
    %v565 = vsel %vm563, 1, 0
    %v566 = vsel %vm564, 1, 0
    %v567 = vcvt.s32.f32 %v565
    %v568 = vcvt.s32.f32 %v566
    %570 = vset.pattern.permute.xlu0 0
    %571 = vperm.xlu0 %570, %v567
    %v572 = vpop.permute.xlu0 %571
    %575 = vset.pattern.permute.xlu0 0
    %576 = vperm.xlu0 %575, %v568
    %v577 = vpop.permute.xlu0 %576
    %v579 = vlaneseq
    %v580 = vshrl.u32 %v579, 7
    %v581 = vsub.s32 2, %v580
    %v582 = vrot.slane %v497, %v581
    %v583 = vlaneseq
    %v584 = vshrl.u32 %v583, 7
    %v585 = vsub.s32 2, %v584
    %v586 = vrot.slane %v498, %v585
    %v587 = vmul.f32 %v572, %v582
    %v588 = vmul.f32 %v572, %v586
    %v589 = vmul.f32 %v577, %v582
    %v590 = vmul.f32 %v577, %v586
    %v591 = vadd.f32 %v559, %v587
    %v592 = vadd.f32 %v560, %v588
    %v593 = vadd.f32 %v561, %v589
    %v594 = vadd.f32 %v562, %v590
    %vm595 = vcmp.eq.s32.totalorder %v20, 2
    %vm596 = vcmp.eq.s32.totalorder %v21, 2
    %v597 = vsel %vm595, 1, 0
    %v598 = vsel %vm596, 1, 0
    %v599 = vcvt.s32.f32 %v597
    %v600 = vcvt.s32.f32 %v598
    %602 = vset.pattern.permute.xlu0 0
    %603 = vperm.xlu0 %602, %v599
    %v604 = vpop.permute.xlu0 %603
    %607 = vset.pattern.permute.xlu0 0
    %608 = vperm.xlu0 %607, %v600
    %v609 = vpop.permute.xlu0 %608
    %v611 = vlaneseq
    %v612 = vshrl.u32 %v611, 7
    %v613 = vsub.s32 3, %v612
    %v614 = vrot.slane %v497, %v613
    %v615 = vlaneseq
    %v616 = vshrl.u32 %v615, 7
    %v617 = vsub.s32 3, %v616
    %v618 = vrot.slane %v498, %v617
    %v619 = vmul.f32 %v604, %v614
    %v620 = vmul.f32 %v604, %v618
    %v621 = vmul.f32 %v609, %v614
    %v622 = vmul.f32 %v609, %v618
    %v623 = vadd.f32 %v591, %v619
    %v624 = vadd.f32 %v592, %v620
    %v625 = vadd.f32 %v593, %v621
    %v626 = vadd.f32 %v594, %v622
    %vm627 = vcmp.eq.s32.totalorder %v20, 3
    %vm628 = vcmp.eq.s32.totalorder %v21, 3
    %v629 = vsel %vm627, 1, 0
    %v630 = vsel %vm628, 1, 0
    %v631 = vcvt.s32.f32 %v629
    %v632 = vcvt.s32.f32 %v630
    %634 = vset.pattern.permute.xlu0 0
    %635 = vperm.xlu0 %634, %v631
    %v636 = vpop.permute.xlu0 %635
    %639 = vset.pattern.permute.xlu0 0
    %640 = vperm.xlu0 %639, %v632
    %v641 = vpop.permute.xlu0 %640
    %v643 = vlaneseq
    %v644 = vshrl.u32 %v643, 7
    %v645 = vsub.s32 4, %v644
    %v646 = vrot.slane %v497, %v645
    %v647 = vlaneseq
    %v648 = vshrl.u32 %v647, 7
    %v649 = vsub.s32 4, %v648
    %v650 = vrot.slane %v498, %v649
    %v651 = vmul.f32 %v636, %v646
    %v652 = vmul.f32 %v636, %v650
    %v653 = vmul.f32 %v641, %v646
    %v654 = vmul.f32 %v641, %v650
    %v655 = vadd.f32 %v623, %v651
    %v656 = vadd.f32 %v624, %v652
    %v657 = vadd.f32 %v625, %v653
    %v658 = vadd.f32 %v626, %v654
    %659 = vst [vmem:[#allocation2] sm:$0xff] %v655
    %660 = vst [vmem:[#allocation2 + $0x8] sm:$0xff] %v656
    %661 = vst [vmem:[#allocation2 + $0x10] sm:$0xff] %v657
    %662 = vst [vmem:[#allocation2 + $0x18] sm:$0xff] %v658
    // Predicated region
    $region18: #{tpu_custom_call.1} parent=1 // pred_check
      _
    $region19: #{tpu_custom_call.1} parent=1 // pred_check_branch
      %664 = sbr.rel (0) target = $region21
    $region20: #{tpu_custom_call.1} parent=1 // pred_region
      %s666 = ssub.s32 512, 512
      %667 = vsyncadd [#allocation3], %s666
      %s668 = sshll.u32 [#allocation2], 4
      %s669 = int_to_ptr.vmem [resolvable:$true] %s668
      %674 = dma.vmem_to_hbm [thread:$0]  %s669, 512, %s4, [#allocation3], 256, 256, 16
    $region21: #{tpu_custom_call.1} parent=1 // pred_fallthru
      _
    // Predicated region
    $region22: #{tpu_custom_call.1} parent=1 // pred_check
      _
    $region23: #{tpu_custom_call.1} parent=1 // pred_check_branch
      %676 = sbr.rel (0) target = $region25
    $region24: #{tpu_custom_call.1} parent=1 // pred_region
      %677 = dma.done [#allocation3], 512
    $region25: #{tpu_custom_call.1} parent=1 // pred_fallthru
      _
    %678 = vsyncpa [#allocation3], 1

</llo_original>
